<compile_context>
chip_gen: v6e
topology: v6e:2x2x1
jax: 0.10.0
libtpu: 0.0.40
codegen_flags: <defaults>
</compile_context>

<pallas_src>
import functools

import jax
import jax.numpy as jnp
from jax import lax
from jax.experimental import pallas as pl
from jax.experimental.pallas import tpu as pltpu


def _round_up(x, m):
    return (x + m - 1) // m * m


# ---------------------------------------------------------------------------
# Small-problem path: adjacency resident, single grid point, in-kernel loop.
# ---------------------------------------------------------------------------
def _hyperconv_small_kernel(adj_ref, emb_ref, out_ref, *, layers, inv_denom, ds, d):
    adj = adj_ref[...].astype(jnp.float32)
    e0 = emb_ref[...].astype(jnp.float32)

    def body(_, carry):
        cur, acc = carry
        cur = jnp.dot(adj, cur, preferred_element_type=jnp.float32)
        return cur, acc + cur

    _, acc = lax.fori_loop(0, layers, body, (e0, e0), unroll=True)
    avg = acc * inv_denom  # static 1/(layers+1), no divide, no num_programs math

    # Fold torch.split(dim=0, 4 chunks) + torch.cat(dim=1) into the store.
    for q in range(4):
        out_ref[:, q * d:(q + 1) * d] = avg[q * ds:(q + 1) * ds, :].astype(out_ref.dtype)


def _hyperconv_small(adj, emb, layers, inv_denom):
    N, D = emb.shape
    ds = N // 4
    kernel = functools.partial(
        _hyperconv_small_kernel, layers=layers, inv_denom=inv_denom, ds=ds, d=D
    )

    adj_b = adj.dtype.itemsize
    emb_b = emb.dtype.itemsize
    flops = 2 * layers * N * N * D
    bytes_accessed = N * N * adj_b + N * D * emb_b + ds * 4 * D * emb_b

    resident = 2 * (N * N * adj_b + N * D * emb_b + ds * 4 * D * emb_b)
    cp = dict(dimension_semantics=("arbitrary",))
    if resident > 24 * 2**20:
        cp["vmem_limit_bytes"] = int(min(resident * 1.3, 100 * 2**20))

    return pl.pallas_call(
        kernel,
        out_shape=jax.ShapeDtypeStruct((ds, 4 * D), emb.dtype),
        grid_spec=pltpu.PrefetchScalarGridSpec(
            num_scalar_prefetch=0,
            grid=(1,),
            in_specs=[
                pl.BlockSpec((N, N), lambda i: (0, 0)),
                pl.BlockSpec((N, D), lambda i: (0, 0)),
            ],
            out_specs=pl.BlockSpec((ds, 4 * D), lambda i: (0, 0)),
        ),
        compiler_params=pltpu.CompilerParams(**cp),
        cost_estimate=pl.CostEstimate(
            flops=flops, transcendentals=0, bytes_accessed=bytes_accessed
        ),
    )(adj, emb)


# ---------------------------------------------------------------------------
# Tiled/streamed path: grid = (layers, row tiles, k tiles), reduction last.
# ---------------------------------------------------------------------------
def _hyperconv_tiled_kernel(adj_ref, emb_ref, out_ref,
                            cur_ref, acc_ref, part_ref,
                            *, layers, inv_denom, tm, tk):
    l = pl.program_id(0)
    i = pl.program_id(1)
    k = pl.program_id(2)
    nk = pl.num_programs(2)

    # First grid step: init ping-pong slot 0 and the layer-sum accumulator
    # with the layer-0 embedding (the "unsqueeze(0)" term).
    @pl.when((l == 0) & (i == 0) & (k == 0))
    def _():
        e0 = emb_ref[...].astype(jnp.float32)
        cur_ref[0] = e0
        acc_ref[...] = e0

    slot_in = l % 2          # read slot for this layer
    slot_out = 1 - slot_in   # write slot for this layer (ping-pong)

    @pl.when(k == 0)
    def _():
        part_ref[...] = jnp.zeros_like(part_ref)

    # (tm x tk) @ (tk x Dp) MXU contribution of this k tile.
    a_tile = adj_ref[...]
    c_row0 = pl.multiple_of(k * tk, tk)
    c_tile = cur_ref[slot_in, pl.ds(c_row0, tk), :]
    if a_tile.dtype != jnp.float32:
        c_tile = c_tile.astype(a_tile.dtype)   # e.g. bf16 x bf16, f32 accumulate
    new_part = part_ref[...] + jnp.dot(
        a_tile, c_tile, preferred_element_type=jnp.float32
    )
    part_ref[...] = new_part

    r0 = pl.multiple_of(i * tm, tm)

    # End of k sweep: commit this row tile to cur / acc, reusing the value
    # already in registers (no reload of the dot result).
    @pl.when(k == nk - 1)
    def _():
        cur_ref[slot_out, pl.ds(r0, tm), :] = new_part
        acc_ref[pl.ds(r0, tm), :] = acc_ref[pl.ds(r0, tm), :] + new_part

    # Last layer: write the averaged, column-packed output tile.
    @pl.when((k == nk - 1) & (l == layers - 1))
    def _():
        out_ref[...] = (acc_ref[pl.ds(r0, tm), :] * inv_denom).astype(out_ref.dtype)


def _hyperconv_tiled(adj, emb, layers, inv_denom):
    N, D = emb.shape
    ds = N // 4
    dp = _round_up(D, 128)            # lane-dense embedding width
    if dp != D:
        emb = jnp.pad(emb, ((0, 0), (0, dp - D)))

    # Tile sizes: lane (tk) multiple of 128, sublane (tm) multiple of 8 and a
    # divisor of a quarter so each row tile maps to exactly one output column
    # block of the folded (N//4, 4*Dp) output.
    tk = 256 if N % 256 == 0 else 128
    tm = next(t for t in (256, 128, 64, 32, 16, 8) if ds % t == 0)
    ni = N // tm
    nk = N // tk
    bpq = ds // tm                    # row blocks per quarter

    kernel = functools.partial(
        _hyperconv_tiled_kernel, layers=layers, inv_denom=inv_denom, tm=tm, tk=tk
    )

    adj_b = adj.dtype.itemsize
    emb_b = emb.dtype.itemsize
    flops = 2 * layers * N * N * dp
    bytes_accessed = layers * N * N * adj_b + N * dp * emb_b + ds * 4 * dp * emb_b

    # Rough resident-VMEM estimate: scratch + double-buffered blocks.
    est = (3 * N * dp * 4 + tm * dp * 4          # cur (x2) + acc + partial
           + 2 * tm * tk * adj_b                 # adjacency tile double buffer
           + 2 * N * dp * emb_b                  # embedding block
           + 2 * tm * dp * emb_b)                # output tile
    cp = dict(dimension_semantics=("arbitrary", "arbitrary", "arbitrary"))
    if est > 24 * 2**20:
        cp["vmem_limit_bytes"] = int(min(est * 1.4, 100 * 2**20))

    out_p = pl.pallas_call(
        kernel,
        out_shape=jax.ShapeDtypeStruct((ds, 4 * dp), emb.dtype),
        grid_spec=pltpu.PrefetchScalarGridSpec(
            num_scalar_prefetch=0,
            grid=(layers, ni, nk),
            in_specs=[
                # Streamed, pipelined adjacency tiles (dominant HBM traffic).
                pl.BlockSpec((tm, tk), lambda l, i, k: (i, k)),
                # Resident embedding (constant index map -> DMA'd once).
                pl.BlockSpec((N, dp), lambda l, i, k: (0, 0)),
            ],
            # Fold the 4-way row split + column concat into a lane-dense out.
            out_specs=pl.BlockSpec((tm, dp), lambda l, i, k: (i % bpq, i // bpq)),
            scratch_shapes=[
                pltpu.VMEM((2, N, dp), jnp.float32),  # ping-pong running embedding
                pltpu.VMEM((N, dp), jnp.float32),     # layer-sum accumulator
                pltpu.VMEM((tm, dp), jnp.float32),    # per-row-tile k partial
            ],
        ),
        compiler_params=pltpu.CompilerParams(**cp),
        cost_estimate=pl.CostEstimate(
            flops=flops, transcendentals=0, bytes_accessed=bytes_accessed
        ),
    )(adj, emb)

    if dp == D:
        return out_p
    return out_p.reshape(ds, 4, dp)[:, :, :D].reshape(ds, 4 * D)


# ---------------------------------------------------------------------------
# Public wrapper (HyperConv.forward equivalent).
# ---------------------------------------------------------------------------
def hyperconv_forward(adjacency, embedding, layers, *, adj_dtype=None,
                      force_tiled=None):
    """adjacency: (N, N) dense; embedding: (N, D) -> (N//4, 4*D)."""
    N, D = embedding.shape
    assert adjacency.shape == (N, N)
    assert N % 4 == 0
    assert layers >= 1

    inv_denom = 1.0 / float(layers + 1)
    adj = adjacency if adj_dtype is None else adjacency.astype(adj_dtype)

    can_tile = (N % 128 == 0)
    if force_tiled is None:
        resident = 2 * N * N * adj.dtype.itemsize + 4 * N * D * 4
        use_tiled = can_tile and resident > 8 * 2**20
    else:
        use_tiled = bool(force_tiled)

    if use_tiled:
        if not can_tile:
            raise ValueError("tiled path requires N % 128 == 0")
        return _hyperconv_tiled(adj, embedding, layers, inv_denom)
    # TODO(synk): large N that is not a multiple of 128 would need padded /
    # block-sparse row tiling; it currently falls back to the resident path.
    return _hyperconv_small(adj, embedding, layers, inv_denom)


def _reference(adjacency, embedding, layers):
    adj = adjacency.astype(jnp.float32)
    cur = embedding.astype(jnp.float32)
    acc = cur
    for _ in range(layers):
        cur = adj @ cur
        acc = acc + cur
    avg = acc / (layers + 1)
    N, D = embedding.shape
    ds = N // 4
    return jnp.concatenate(
        [avg[q * ds:(q + 1) * ds] for q in range(4)], axis=1
    ).astype(embedding.dtype)


if __name__ == "__main__":
    key = jax.random.PRNGKey(0)
    k1, k2, k3, k4 = jax.random.split(key, 4)

    # --- 1. Tiny problem (matches the torch example scale) -> resident path.
    layers = 2
    N, D = 16, 32
    adj_raw = jax.random.uniform(k1, (N, N), dtype=jnp.float32)
    adjacency = adj_raw / jnp.sum(adj_raw, axis=1, keepdims=True)
    embedding = jax.random.normal(k2, (N, D), dtype=jnp.float32)

    out = jax.block_until_ready(hyperconv_forward(adjacency, embedding, layers))
    ref = _reference(adjacency, embedding, layers)
    assert out.shape == (N // 4, 4 * D), out.shape
    assert jnp.allclose(out, ref, atol=1e-5, rtol=1e-5), "small-path mismatch"

    # --- 2. Larger problem -> tiled / streamed path (f32 adjacency).
    layers2, N2, D2 = 3, 512, 128
    adj2_raw = jax.random.uniform(k3, (N2, N2), dtype=jnp.float32)
    adjacency2 = adj2_raw / jnp.sum(adj2_raw, axis=1, keepdims=True)
    embedding2 = jax.random.normal(k4, (N2, D2), dtype=jnp.float32)

    out2 = jax.block_until_ready(
        hyperconv_forward(adjacency2, embedding2, layers2, force_tiled=True))
    ref2 = _reference(adjacency2, embedding2, layers2)
    assert out2.shape == (N2 // 4, 4 * D2), out2.shape
    assert jnp.allclose(out2, ref2, atol=1e-4, rtol=1e-4), "tiled-path mismatch"

    # --- 3. Same problem with bf16-streamed adjacency (halved HBM traffic).
    out3 = jax.block_until_ready(
        hyperconv_forward(adjacency2, embedding2, layers2,
                          adj_dtype=jnp.bfloat16, force_tiled=True))
    assert jnp.allclose(out3, ref2, atol=5e-2, rtol=5e-2), "bf16 tiled mismatch"

    print("KERNEL_OK")
</pallas_src>

<mosaic_0001>
module attributes {stable_mosaic.version = 11 : i64} {
  func.func @_hyperconv_small_kernel(%arg0: i32, %arg1: memref<16x16xf32, #tpu.memory_space<vmem>>, %arg2: memref<16x32xf32, #tpu.memory_space<vmem>>, %arg3: memref<4x128xf32, #tpu.memory_space<vmem>>) attributes {dimension_semantics = [#tpu.dimension_semantics<arbitrary>], iteration_bounds = array<i64: 1>, scalar_prefetch = 0 : i64, scratch_operands = 0 : i64, tpu.core_type = #tpu.core_type<tc>, window_params = [{pipeline_mode = #tpu.pipeline_mode<synchronous>, transform_indices = @transform_0, window_bounds = array<i64: 16, 16>}, {pipeline_mode = #tpu.pipeline_mode<synchronous>, transform_indices = @transform_1, window_bounds = array<i64: 16, 32>}, {pipeline_mode = #tpu.pipeline_mode<synchronous>, transform_indices = @transform_2, window_bounds = array<i64: 4, 128>}]} {
    %c0 = arith.constant 0 : index
    %c0_0 = arith.constant 0 : index
    %0 = vector.load %arg1[%c0, %c0_0] : memref<16x16xf32, #tpu.memory_space<vmem>>, vector<16x16xf32>
    %c0_1 = arith.constant 0 : index
    %c0_2 = arith.constant 0 : index
    %1 = vector.load %arg2[%c0_1, %c0_2] : memref<16x32xf32, #tpu.memory_space<vmem>>, vector<16x32xf32>
    %c0_i32 = arith.constant 0 : i32
    %cst = arith.constant dense<0.000000e+00> : vector<16x32xf32>
    %2 = tpu.matmul %0, %1, %cst {dimension_numbers = #tpu.dot_dimension_numbers<[1], [0], [0], [1], [0, 0, 1, 1], [], []>} : vector<16x16xf32>, vector<16x32xf32>, vector<16x32xf32> -> vector<16x32xf32>
    %3 = arith.addf %1, %2 : vector<16x32xf32>
    %c1_i32 = arith.constant 1 : i32
    %cst_3 = arith.constant dense<0.000000e+00> : vector<16x32xf32>
    %4 = tpu.matmul %0, %2, %cst_3 {dimension_numbers = #tpu.dot_dimension_numbers<[1], [0], [0], [1], [0, 0, 1, 1], [], []>} : vector<16x16xf32>, vector<16x32xf32>, vector<16x32xf32> -> vector<16x32xf32>
    %5 = arith.addf %3, %4 : vector<16x32xf32>
    %cst_4 = arith.constant 0.333333343 : f32
    %6 = vector.broadcast %cst_4 : f32 to vector<16x32xf32>
    %7 = arith.mulf %5, %6 : vector<16x32xf32>
    %8 = vector.extract_strided_slice %7 {offsets = [0, 0], sizes = [4, 32], strides = [1, 1]} : vector<16x32xf32> to vector<4x32xf32>
    %c0_5 = arith.constant 0 : index
    %c0_6 = arith.constant 0 : index
    %9 = vector.load %arg3[%c0_5, %c0_6] : memref<4x128xf32, #tpu.memory_space<vmem>>, vector<4x32xf32>
    tpu.vector_store %arg3[%c0_5, %c0_6], %8 {strides = array<i32>} : memref<4x128xf32, #tpu.memory_space<vmem>>, vector<4x32xf32>,
    %10 = vector.extract_strided_slice %7 {offsets = [4, 0], sizes = [4, 32], strides = [1, 1]} : vector<16x32xf32> to vector<4x32xf32>
    %c0_7 = arith.constant 0 : index
    %c32 = arith.constant 32 : index
    %11 = vector.load %arg3[%c0_7, %c32] : memref<4x128xf32, #tpu.memory_space<vmem>>, vector<4x32xf32>
    tpu.vector_store %arg3[%c0_7, %c32], %10 {strides = array<i32>} : memref<4x128xf32, #tpu.memory_space<vmem>>, vector<4x32xf32>,
    %12 = vector.extract_strided_slice %7 {offsets = [8, 0], sizes = [4, 32], strides = [1, 1]} : vector<16x32xf32> to vector<4x32xf32>
    %c0_8 = arith.constant 0 : index
    %c64 = arith.constant 64 : index
    %13 = vector.load %arg3[%c0_8, %c64] : memref<4x128xf32, #tpu.memory_space<vmem>>, vector<4x32xf32>
    tpu.vector_store %arg3[%c0_8, %c64], %12 {strides = array<i32>} : memref<4x128xf32, #tpu.memory_space<vmem>>, vector<4x32xf32>,
    %14 = vector.extract_strided_slice %7 {offsets = [12, 0], sizes = [4, 32], strides = [1, 1]} : vector<16x32xf32> to vector<4x32xf32>
    %c0_9 = arith.constant 0 : index
    %c96 = arith.constant 96 : index
    %15 = vector.load %arg3[%c0_9, %c96] : memref<4x128xf32, #tpu.memory_space<vmem>>, vector<4x32xf32>
    tpu.vector_store %arg3[%c0_9, %c96], %14 {strides = array<i32>} : memref<4x128xf32, #tpu.memory_space<vmem>>, vector<4x32xf32>,
    return
  }
  func.func @transform_0(%arg0: i32) -> (i32, i32) {
    %c0_i32 = arith.constant 0 : i32
    %c0_i32_0 = arith.constant 0 : i32
    %c0_i32_1 = arith.constant 0 : i32
    return %c0_i32, %c0_i32_0 : i32, i32
  }
  func.func @transform_1(%arg0: i32) -> (i32, i32) {
    %c0_i32 = arith.constant 0 : i32
    %c0_i32_0 = arith.constant 0 : i32
    %c0_i32_1 = arith.constant 0 : i32
    return %c0_i32, %c0_i32_0 : i32, i32
  }
  func.func @transform_2(%arg0: i32) -> (i32, i32) {
    %c0_i32 = arith.constant 0 : i32
    %c0_i32_0 = arith.constant 0 : i32
    %c0_i32_1 = arith.constant 0 : i32
    return %c0_i32, %c0_i32_0 : i32, i32
  }
}

</mosaic_0001>

<llo_original>
// kernel: tpu_custom_call.1
$region0: #{tpu_custom_call.1}
  #allocation0 [shape = 'u32[]', space=smem, size = 0x4, offset = 0x4, fixed_abs, tag = 'smem constant byte address 0x4 - core index']
  #allocation1 [shape = 'u32[144,128]{1,0:T(1,128)}', space=vmem, size = 0x12000, scoped, tag = 'internal scratch']
  %s0 = inlined_call_operand.hbm [shape: f32[16,16], index: 0, kind: input, shape index: {}]
  %s1 = inlined_call_operand.hbm [shape: f32[16,32], index: 1, kind: input, shape index: {}]
  %s2 = inlined_call_operand.hbm [shape: f32[4,128], index: 2, kind: output, shape index: {}]
  %s3 = sld [smem:[#allocation0]]
  $region26: #{tpu_custom_call.1} parent=0
    _
  %s5 = ssub.s32 1, %s3
  %s6 = scalar_select 0, %s5, %s3
  $region1: #{tpu_custom_call.1} parent=0
    #allocation2 [shape = 'u8[8192]{0}', space=vmem, size = 0x2000, scoped, tag = 'input window, operand 0, single buffered']
    #allocation3 [shape = 's32[1]{0}', space=sflag, size = 0x4, scoped, tag = 'scoped memory for tpu_custom_call.1']
    #allocation4 [shape = 's32[1]{0}', space=sflag, size = 0x4, scoped, tag = 'scoped memory for tpu_custom_call.1']
    #allocation5 [shape = 'u8[8192]{0}', space=vmem, size = 0x2000, scoped, tag = 'input window, operand 1, single buffered']
    #allocation6 [shape = 's32[1]{0}', space=sflag, size = 0x4, scoped, tag = 'scoped memory for tpu_custom_call.1']
    #allocation7 [shape = 'u8[2048]{0}', space=vmem, size = 0x800, scoped, tag = 'output window, operand 0, single buffered']
    %7 = vsyncpa [#allocation3], 0
    %8 = vsyncpa [#allocation6], 0
    %9 = vsyncpa [#allocation4], 0
    // Predicated region
    $region2: #{tpu_custom_call.1} parent=1 // pred_check
      _
    $region3: #{tpu_custom_call.1} parent=1 // pred_check_branch
      %11 = sbr.rel (0) target = $region5
    $region4: #{tpu_custom_call.1} parent=1 // pred_region
      %s13 = ssub.s32 256, 256
      %14 = vsyncadd [#allocation3], %s13
      %s15 = sshll.u32 [#allocation2], 4
      %s16 = int_to_ptr.vmem [resolvable:$true] %s15
      %21 = dma.hbm_to_vmem [thread:$0]  %s0, 256, %s16, [#allocation3], 128, 128, 8
    $region5: #{tpu_custom_call.1} parent=1 // pred_fallthru
      _
    // Predicated region
    $region6: #{tpu_custom_call.1} parent=1 // pred_check
      _
    $region7: #{tpu_custom_call.1} parent=1 // pred_check_branch
      %23 = sbr.rel (0) target = $region9
    $region8: #{tpu_custom_call.1} parent=1 // pred_region
      %s25 = ssub.s32 256, 256
      %26 = vsyncadd [#allocation6], %s25
      %s27 = sshll.u32 [#allocation5], 4
      %s28 = int_to_ptr.vmem [resolvable:$true] %s27
      %33 = dma.hbm_to_vmem [thread:$0]  %s1, 256, %s28, [#allocation6], 128, 128, 8
    $region9: #{tpu_custom_call.1} parent=1 // pred_fallthru
      _
    // Predicated region
    $region10: #{tpu_custom_call.1} parent=1 // pred_check
      _
    $region11: #{tpu_custom_call.1} parent=1 // pred_check_branch
      %35 = sbr.rel (0) target = $region13
    $region12: #{tpu_custom_call.1} parent=1 // pred_region
      %36 = dma.done [#allocation3], 256
    $region13: #{tpu_custom_call.1} parent=1 // pred_fallthru
      _
    // Predicated region
    $region14: #{tpu_custom_call.1} parent=1 // pred_check
      _
    $region15: #{tpu_custom_call.1} parent=1 // pred_check_branch
      %38 = sbr.rel (0) target = $region17
    $region16: #{tpu_custom_call.1} parent=1 // pred_region
      %39 = dma.done [#allocation6], 256
    $region17: #{tpu_custom_call.1} parent=1 // pred_fallthru
      _
    %v40 = vld [vmem:[#allocation2] sm:$0xff]
    %v41 = vld [vmem:[#allocation2 + $0x8] sm:$0xff]
    %v42 = vld [vmem:[#allocation5] sm:$0xff]
    %v43 = vld [vmem:[#allocation5 + $0x8] sm:$0xff]
    %vm44 = vcmask 130048
    %v46 = vsel %vm44, %v40, 0
    %v49 = vsel %vm44, %v41, 0
    %51 = vmatprep.subr.mxu0 0.0
    %52 = vmatpush1.msra.mxu0 0.0
    %53 = vmatprep.subr.mxu0 0.0
    %54 = vmatpush1.msra.mxu0 0.0
    %55 = vmatprep.subr.mxu0 0.0
    %56 = vmatpush1.msra.mxu0 0.0
    %57 = vmatprep.subr.mxu0 0.0
    %58 = vmatpush1.msra.mxu0 0.0
    %59 = vmatprep.subr.mxu0 0.0
    %60 = vmatpush1.msra.mxu0 0.0
    %61 = vmatprep.subr.mxu0 0.0
    %62 = vmatpush1.msra.mxu0 0.0
    %63 = vmatprep.subr.mxu0 0.0
    %64 = vmatpush1.msra.mxu0 0.0
    %65 = vmatprep.subr.mxu0 0.0
    %66 = vmatpush1.msra.mxu0 0.0
    %67 = vmatprep.subr.mxu0 0.0
    %68 = vmatpush1.msra.mxu0 0.0
    %69 = vmatprep.subr.mxu0 0.0
    %70 = vmatpush1.msra.mxu0 0.0
    %71 = vmatprep.subr.mxu0 0.0
    %72 = vmatpush1.msra.mxu0 0.0
    %73 = vmatprep.subr.mxu0 0.0
    %74 = vmatpush1.msra.mxu0 0.0
    %75 = vmatprep.subr.mxu0 0.0
    %76 = vmatpush1.msra.mxu0 0.0
    %77 = vmatprep.subr.mxu0 0.0
    %78 = vmatpush1.msra.mxu0 0.0
    %79 = vmatprep.subr.mxu0 0.0
    %80 = vmatpush1.msra.mxu0 %v43
    %81 = vmatprep.subr.mxu0 0.0
    %82 = vmatpush1.msra.mxu0 %v42
    %83 = vmatprep.subr.mxu0 0.0
    %84 = vmatpush2.msra.mxu0 0.0
    %85 = vmatprep.subr.mxu0 0.0
    %86 = vmatpush2.msra.mxu0 0.0
    %87 = vmatprep.subr.mxu0 0.0
    %88 = vmatpush2.msra.mxu0 0.0
    %89 = vmatprep.subr.mxu0 0.0
    %90 = vmatpush2.msra.mxu0 0.0
    %91 = vmatprep.subr.mxu0 0.0
    %92 = vmatpush2.msra.mxu0 0.0
    %93 = vmatprep.subr.mxu0 0.0
    %94 = vmatpush2.msra.mxu0 0.0
    %95 = vmatprep.subr.mxu0 0.0
    %96 = vmatpush2.msra.mxu0 0.0
    %97 = vmatprep.subr.mxu0 0.0
    %98 = vmatpush2.msra.mxu0 0.0
    %99 = vmatprep.subr.mxu0 0.0
    %100 = vmatpush2.msra.mxu0 0.0
    %101 = vmatprep.subr.mxu0 0.0
    %102 = vmatpush2.msra.mxu0 0.0
    %103 = vmatprep.subr.mxu0 0.0
    %104 = vmatpush2.msra.mxu0 0.0
    %105 = vmatprep.subr.mxu0 0.0
    %106 = vmatpush2.msra.mxu0 0.0
    %107 = vmatprep.subr.mxu0 0.0
    %108 = vmatpush2.msra.mxu0 0.0
    %109 = vmatprep.subr.mxu0 0.0
    %110 = vmatpush2.msra.mxu0 0.0
    %111 = vmatprep.subr.mxu0 0.0
    %112 = vmatpush2.msra.mxu0 0.0
    %113 = vmatprep.subr.mxu0 0.0
    %114 = vmatpush2.msra.mxu0 0.0
    %115 = vmatprep.mubr.f32.mxu0 0.0
    %116 = vmatmul.mubr.f32.gmra.mxu0 %v46
    %v117 = vpop.f32.mrf.mxu0
    %v118 = vadd.f32 0.0, %v117
    %v119 = vpop.f32.mrf.mxu0
    %120 = vmatprep.mubr.f32.mxu0 0.0
    %121 = vmatmul.mubr.f32.gmra.mxu0 %v49
    %v122 = vpop.f32.mrf.mxu0
    %v123 = vadd.f32 0.0, %v122
    %v124 = vpop.f32.mrf.mxu0
    %125 = vdwg.mxu0
    %v126 = vadd.f32 %v42, %v118
    %v127 = vadd.f32 %v43, %v123
    %128 = vmatprep.subr.mxu0 0.0
    %129 = vmatpush1.msra.mxu0 0.0
    %130 = vmatprep.subr.mxu0 0.0
    %131 = vmatpush1.msra.mxu0 0.0
    %132 = vmatprep.subr.mxu0 0.0
    %133 = vmatpush1.msra.mxu0 0.0
    %134 = vmatprep.subr.mxu0 0.0
    %135 = vmatpush1.msra.mxu0 0.0
    %136 = vmatprep.subr.mxu0 0.0
    %137 = vmatpush1.msra.mxu0 0.0
    %138 = vmatprep.subr.mxu0 0.0
    %139 = vmatpush1.msra.mxu0 0.0
    %140 = vmatprep.subr.mxu0 0.0
    %141 = vmatpush1.msra.mxu0 0.0
    %142 = vmatprep.subr.mxu0 0.0
    %143 = vmatpush1.msra.mxu0 0.0
    %144 = vmatprep.subr.mxu0 0.0
    %145 = vmatpush1.msra.mxu0 0.0
    %146 = vmatprep.subr.mxu0 0.0
    %147 = vmatpush1.msra.mxu0 0.0
    %148 = vmatprep.subr.mxu0 0.0
    %149 = vmatpush1.msra.mxu0 0.0
    %150 = vmatprep.subr.mxu0 0.0
    %151 = vmatpush1.msra.mxu0 0.0
    %152 = vmatprep.subr.mxu0 0.0
    %153 = vmatpush1.msra.mxu0 0.0
    %154 = vmatprep.subr.mxu0 0.0
    %155 = vmatpush1.msra.mxu0 0.0
    %156 = vmatprep.subr.mxu0 0.0
    %157 = vmatpush1.msra.mxu0 %v123
    %158 = vmatprep.subr.mxu0 0.0
    %159 = vmatpush1.msra.mxu0 %v118
    %160 = vmatprep.subr.mxu0 0.0
    %161 = vmatpush2.msra.mxu0 0.0
    %162 = vmatprep.subr.mxu0 0.0
    %163 = vmatpush2.msra.mxu0 0.0
    %164 = vmatprep.subr.mxu0 0.0
    %165 = vmatpush2.msra.mxu0 0.0
    %166 = vmatprep.subr.mxu0 0.0
    %167 = vmatpush2.msra.mxu0 0.0
    %168 = vmatprep.subr.mxu0 0.0
    %169 = vmatpush2.msra.mxu0 0.0
    %170 = vmatprep.subr.mxu0 0.0
    %171 = vmatpush2.msra.mxu0 0.0
    %172 = vmatprep.subr.mxu0 0.0
    %173 = vmatpush2.msra.mxu0 0.0
    %174 = vmatprep.subr.mxu0 0.0
    %175 = vmatpush2.msra.mxu0 0.0
    %176 = vmatprep.subr.mxu0 0.0
    %177 = vmatpush2.msra.mxu0 0.0
    %178 = vmatprep.subr.mxu0 0.0
    %179 = vmatpush2.msra.mxu0 0.0
    %180 = vmatprep.subr.mxu0 0.0
    %181 = vmatpush2.msra.mxu0 0.0
    %182 = vmatprep.subr.mxu0 0.0
    %183 = vmatpush2.msra.mxu0 0.0
    %184 = vmatprep.subr.mxu0 0.0
    %185 = vmatpush2.msra.mxu0 0.0
    %186 = vmatprep.subr.mxu0 0.0
    %187 = vmatpush2.msra.mxu0 0.0
    %188 = vmatprep.subr.mxu0 0.0
    %189 = vmatpush2.msra.mxu0 0.0
    %190 = vmatprep.subr.mxu0 0.0
    %191 = vmatpush2.msra.mxu0 0.0
    %192 = vmatprep.mubr.f32.mxu0 0.0
    %193 = vmatmul.mubr.f32.gmra.mxu0 %v46
    %v194 = vpop.f32.mrf.mxu0
    %v195 = vadd.f32 0.0, %v194
    %v196 = vpop.f32.mrf.mxu0
    %197 = vmatprep.mubr.f32.mxu0 0.0
    %198 = vmatmul.mubr.f32.gmra.mxu0 %v49
    %v199 = vpop.f32.mrf.mxu0
    %v200 = vadd.f32 0.0, %v199
    %v201 = vpop.f32.mrf.mxu0
    %202 = vdwg.mxu0
    %v203 = vadd.f32 %v126, %v195
    %v204 = vadd.f32 %v127, %v200
    %v205 = vmul.f32 %v203, 0.33333334
    %v206 = vmul.f32 %v204, 0.33333334
    %vm207 = vcmask 257024
    %208 = vst.msk [vmem:[#allocation7] sm:$0xf] %vm207, %v205
    %210 = vrot.lane.b32.xlu0 %v205, 32
    %v211 = vpop.permute.xlu0 %210
    %vm213 = vcmask 523524
    %214 = vst.msk [vmem:[#allocation7 - $0x4] sm:$0xf0] %vm213, %v211
    %216 = vrot.lane.b32.xlu0 %v206, 64
    %v217 = vpop.permute.xlu0 %216
    %vm219 = vcmask 781824
    %220 = vst.msk [vmem:[#allocation7] sm:$0xf] %vm219, %v217
    %221 = vrot.lane.b32.xlu0 %v206, 96
    %v222 = vpop.permute.xlu0 %221
    %vm224 = vcmask 1048324
    %225 = vst.msk [vmem:[#allocation7 - $0x4] sm:$0xf0] %vm224, %v222
    // Predicated region
    $region18: #{tpu_custom_call.1} parent=1 // pred_check
      _
    $region19: #{tpu_custom_call.1} parent=1 // pred_check_branch
      %227 = sbr.rel (0) target = $region21
    $region20: #{tpu_custom_call.1} parent=1 // pred_region
      %s229 = ssub.s32 64, 64
      %230 = vsyncadd [#allocation4], %s229
      %s232 = sshll.u32 [#allocation7], 4
      %s233 = int_to_ptr.vmem [resolvable:$true] %s232
      %235 = dma.vmem_to_hbm [thread:$0]  %s233, 64, %s2, [#allocation4]
    $region21: #{tpu_custom_call.1} parent=1 // pred_fallthru
      _
    // Predicated region
    $region22: #{tpu_custom_call.1} parent=1 // pred_check
      _
    $region23: #{tpu_custom_call.1} parent=1 // pred_check_branch
      %237 = sbr.rel (0) target = $region25
    $region24: #{tpu_custom_call.1} parent=1 // pred_region
      %238 = dma.done [#allocation4], 64
    $region25: #{tpu_custom_call.1} parent=1 // pred_fallthru
      _
    %239 = vsyncpa [#allocation3], 1
    %240 = vsyncpa [#allocation6], 1
    %241 = vsyncpa [#allocation4], 1

</llo_original>
